<compile_context>
chip_gen: v5e
topology: v5e:2x2
jax: 0.10.0
libtpu: 0.0.40
codegen_flags: <defaults>
</compile_context>

<pallas_src>
import functools

import jax
import jax.numpy as jnp
import numpy as np
from jax import lax
from jax.experimental import pallas as pl
from jax.experimental.pallas import tpu as pltpu


# ----------------------------------------------------------------------------
# Pallas kernel (single invocation, everything resident in VMEM)
# ----------------------------------------------------------------------------
def global_decoder_kernel(xh_ref, l_ref, clim_ref,
                          wfc_ref, wemb_ref, wq_ref, wkv_ref,
                          wlin_ref, wlin2_ref,
                          b5_ref, blin_ref, blin2_ref,
                          out_ref, *, B, N, H):
    f32 = jnp.float32
    bf16 = jnp.bfloat16

    # Packed biases (kept f32, added after f32 accumulation).
    b_fc = b5_ref[0:1, :]
    b_emb = b5_ref[1:2, :]
    b_q = b5_ref[2:3, :]
    b_k = b5_ref[3:4, :]
    b_v = b5_ref[4:5, :]

    # 1) ret = relu(fc(cat(x, h))) over all B*N station rows — one fused dot
    #    (activation concat done once in the wrapper).
    ret = jnp.dot(xh_ref[...], wfc_ref[...], preferred_element_type=f32) + b_fc
    ret = jnp.maximum(ret, 0.0)                                      # (B*N, H) f32
    ret_bf = ret.astype(bf16)

    # 2) Batch-segment structure built in-kernel (no mask DMAs):
    #    seg[b, r] = 1 iff station row r belongs to batch b.
    r_idx = lax.broadcasted_iota(jnp.int32, (B, B * N), 1)
    b_idx = lax.broadcasted_iota(jnp.int32, (B, B * N), 0)
    seg_f = ((r_idx >= b_idx * N) & (r_idx < (b_idx + 1) * N)).astype(f32)
    mask_add = (seg_f - 1.0) * 1e30                                  # 0 in-block, -1e30 off

    # 3) interpolation_ = per-batch sum_n l[b,n] * ret[b,n,:] via block-diag l.
    lsel = seg_f * l_ref[...]                                        # (B, B*N)
    interp = jnp.dot(lsel.astype(bf16), ret_bf,
                     preferred_element_type=f32)                     # (B, H)

    # 4) embed = Linear(climate), batched over B.
    embed = (jnp.dot(clim_ref[...], wemb_ref[...], preferred_element_type=f32)
             + b_emb)                                                # (B, H)

    # 5) query = Linear(cat(interp, embed)) — static in-kernel row slices of the
    #    full stacked W_query (free views; same math as the concat form).
    query = (jnp.dot(interp.astype(bf16), wq_ref[0:H, :], preferred_element_type=f32)
             + jnp.dot(embed.astype(bf16), wq_ref[H:2 * H, :], preferred_element_type=f32)
             + b_q)                                                  # (B, H)

    # 6) key / value from a single matmul against the packed (H, 2H) weight,
    #    static lane slices of the result.
    kv = jnp.dot(ret_bf, wkv_ref[...], preferred_element_type=f32)   # (B*N, 2H)
    key = kv[:, 0:H] + b_k                                           # (B*N, H)
    value = kv[:, H:2 * H] + b_v                                     # (B*N, H)

    # 7) Dot-product attention over stations, batched across B, lane-major:
    #    scores (B, B*N), additive-masked softmax over the last (lane) axis,
    #    atten = w @ value as a plain matmul.
    scores = lax.dot_general(query.astype(bf16), key.astype(bf16),
                             (((1,), (1,)), ((), ())),
                             preferred_element_type=f32)             # (B, B*N)
    s = scores + mask_add
    m = jnp.max(s, axis=-1, keepdims=True)                           # (B, 1)
    e = jnp.exp(s - m)                                               # masked lanes -> 0
    denom = jnp.sum(e, axis=-1, keepdims=True)                       # (B, 1)
    w = e * pl.reciprocal(denom, approx=True)                        # (B, B*N)
    atten = jnp.dot(w.astype(bf16), value.astype(bf16),
                    preferred_element_type=f32)                      # (B, H)

    # 8) ret = relu(linear(cat(atten, embed))) — static row slices of W_lin.
    o1 = (jnp.dot(atten.astype(bf16), wlin_ref[0:H, :], preferred_element_type=f32)
          + jnp.dot(embed.astype(bf16), wlin_ref[H:2 * H, :], preferred_element_type=f32)
          + blin_ref[...])
    o1 = jnp.maximum(o1, 0.0)                                        # (B, fc_hid)

    # 9) out = linear2(ret) — one full-block store, B on the sublane axis.
    out_ref[...] = (jnp.dot(o1.astype(bf16), wlin2_ref[...], preferred_element_type=f32)
                    + blin2_ref[...])                                # (B, out_ft)


# ----------------------------------------------------------------------------
# Wrapper: cheap layout/packing prep in plain XLA, single pallas_call
# ----------------------------------------------------------------------------
def global_decoder_forward(x, h, l, climate, p):
    # x: (B, T, N, num_ft), h: (B, T, N, latent_dim), l: (B, N), climate: (B, F)
    B, _, N, NF = x.shape
    LD = h.shape[-1]
    H = p["W_fc"].shape[1]
    out_ft = p["W_lin2"].shape[1]

    bf16 = jnp.bfloat16
    f32 = jnp.float32

    # Activation concat done once here -> one fused fc matmul in-kernel.
    xh = jnp.concatenate([x[:, -1], h[:, -1]], axis=-1).reshape(B * N, NF + LD)

    args = (
        xh.astype(bf16),                                             # (B*N, in_ft)
        l.reshape(1, B * N).astype(f32),                             # (1, B*N)
        climate.astype(bf16),                                        # (B, F)
        p["W_fc"].astype(bf16),                                      # (in_ft, H)
        p["W_embed"].astype(bf16),                                   # (F, H)
        p["W_query"].astype(bf16),                                   # (2H, H) full stack
        jnp.concatenate([p["W_key"], p["W_value"]], axis=1).astype(bf16),  # (H, 2H)
        p["W_lin"].astype(bf16),                                     # (2H, fc_hid)
        p["W_lin2"].astype(bf16),                                    # (fc_hid, out_ft)
        jnp.concatenate([p["b_fc"], p["b_embed"], p["b_query"],
                         p["b_key"], p["b_value"]], axis=0).astype(f32),   # (5, H)
        p["b_lin"].astype(f32),                                      # (1, fc_hid)
        p["b_lin2"].astype(f32),                                     # (1, out_ft)
    )

    vspec = pl.BlockSpec(memory_space=pltpu.MemorySpace.VMEM)
    kernel = functools.partial(global_decoder_kernel, B=B, N=N, H=H)
    return pl.pallas_call(
        kernel,
        out_shape=jax.ShapeDtypeStruct((B, out_ft), jnp.float32),
        in_specs=[vspec] * len(args),
        out_specs=vspec,
    )(*args)


# ----------------------------------------------------------------------------
# Pure-JAX reference (f32, module semantics) for correctness check
# ----------------------------------------------------------------------------
def global_decoder_ref(x, h, l, climate, p):
    xh = jnp.concatenate([x[:, -1], h[:, -1]], axis=-1)               # (B, N, in_ft)
    ret = jax.nn.relu(jnp.einsum("bnf,fh->bnh", xh, p["W_fc"]) + p["b_fc"])
    interp = jnp.einsum("bnh,bn->bh", ret, l)                          # (B, H)
    embed = climate @ p["W_embed"] + p["b_embed"]                      # (B, H)
    query = jnp.concatenate([interp, embed], -1) @ p["W_query"] + p["b_query"]
    key = jnp.einsum("bnh,hk->bnk", ret, p["W_key"]) + p["b_key"]      # (B, N, H)
    value = jnp.einsum("bnh,hk->bnk", ret, p["W_value"]) + p["b_value"]
    scores = jnp.einsum("bnk,bk->bn", key, query)                      # (B, N)
    w = jax.nn.softmax(scores, axis=-1)                                # over stations
    atten = jnp.einsum("bn,bnh->bh", w, value)                         # (B, H)
    o1 = jax.nn.relu(jnp.concatenate([atten, embed], -1) @ p["W_lin"] + p["b_lin"])
    return o1 @ p["W_lin2"] + p["b_lin2"]


# ----------------------------------------------------------------------------
# Deterministic parameter construction
# ----------------------------------------------------------------------------
def make_params(key, in_ft, out_ft, cnn_hid_dim, fc_hid_dim, n_features):
    ks = jax.random.split(key, 16)

    def w(k, shape):
        return (0.1 * jax.random.normal(k, shape)).astype(jnp.float32)

    return {
        "W_fc":    w(ks[0], (in_ft, cnn_hid_dim)),           "b_fc":    w(ks[1], (1, cnn_hid_dim)),
        "W_embed": w(ks[2], (n_features, cnn_hid_dim)),      "b_embed": w(ks[3], (1, cnn_hid_dim)),
        "W_query": w(ks[4], (2 * cnn_hid_dim, cnn_hid_dim)), "b_query": w(ks[5], (1, cnn_hid_dim)),
        "W_key":   w(ks[6], (cnn_hid_dim, cnn_hid_dim)),     "b_key":   w(ks[7], (1, cnn_hid_dim)),
        "W_value": w(ks[8], (cnn_hid_dim, cnn_hid_dim)),     "b_value": w(ks[9], (1, cnn_hid_dim)),
        "W_lin":   w(ks[10], (2 * cnn_hid_dim, fc_hid_dim)), "b_lin":   w(ks[11], (1, fc_hid_dim)),
        "W_lin2":  w(ks[12], (fc_hid_dim, out_ft)),          "b_lin2":  w(ks[13], (1, out_ft)),
        # NOTE: the nn.GRU created in __init__ is never used in forward().
    }


if __name__ == "__main__":
    # Small shapes consistent with the module:
    B, T = 2, 3
    num_input_stat = 7           # -> N = num_input_stat - 1 = 6 stations
    N = num_input_stat - 1
    num_ft, latent_dim = 4, 4
    in_ft = num_ft + latent_dim  # fc expects in_ft = num_ft + latent_dim
    out_ft = 1
    cnn_hid_dim, fc_hid_dim, n_features = 32, 16, 7

    key = jax.random.PRNGKey(0)
    k_x, k_h, k_l, k_c, k_p = jax.random.split(key, 5)

    x = jax.random.normal(k_x, (B, T, N, num_ft), dtype=jnp.float32)
    h = jax.random.normal(k_h, (B, T, N, latent_dim), dtype=jnp.float32)
    l = jax.random.normal(k_l, (B, N), dtype=jnp.float32)
    climate = jax.random.normal(k_c, (B, n_features), dtype=jnp.float32)

    params = make_params(k_p, in_ft, out_ft, cnn_hid_dim, fc_hid_dim, n_features)

    out = global_decoder_forward(x, h, l, climate, params)
    out = jax.block_until_ready(out)

    ref = global_decoder_ref(x, h, l, climate, params)
    # Tolerance accounts for bf16 MXU operands (f32 accumulation) and the EUP
    # approx-reciprocal in the softmax denominator; the f32 reference is exact.
    np.testing.assert_allclose(np.asarray(out), np.asarray(ref), rtol=5e-2, atol=5e-2)

    print("KERNEL_OK")
</pallas_src>

<mosaic_0001>
module attributes {stable_mosaic.version = 11 : i64} {
  func.func @global_decoder_kernel(%arg0: memref<12x8xbf16, #tpu.memory_space<vmem>>, %arg1: memref<1x12xf32, #tpu.memory_space<vmem>>, %arg2: memref<2x7xbf16, #tpu.memory_space<vmem>>, %arg3: memref<8x32xbf16, #tpu.memory_space<vmem>>, %arg4: memref<7x32xbf16, #tpu.memory_space<vmem>>, %arg5: memref<64x32xbf16, #tpu.memory_space<vmem>>, %arg6: memref<32x64xbf16, #tpu.memory_space<vmem>>, %arg7: memref<64x16xbf16, #tpu.memory_space<vmem>>, %arg8: memref<16x1xbf16, #tpu.memory_space<vmem>>, %arg9: memref<5x32xf32, #tpu.memory_space<vmem>>, %arg10: memref<1x16xf32, #tpu.memory_space<vmem>>, %arg11: memref<1x1xf32, #tpu.memory_space<vmem>>, %arg12: memref<2x1xf32, #tpu.memory_space<vmem>>) attributes {dimension_semantics = [], scalar_prefetch = 0 : i64, scratch_operands = 0 : i64, tpu.core_type = #tpu.core_type<tc>} {
    %c0 = arith.constant 0 : index
    %c0_0 = arith.constant 0 : index
    %0 = vector.load %arg9[%c0, %c0_0] : memref<5x32xf32, #tpu.memory_space<vmem>>, vector<1x32xf32>
    %c1 = arith.constant 1 : index
    %c0_1 = arith.constant 0 : index
    %1 = vector.load %arg9[%c1, %c0_1] : memref<5x32xf32, #tpu.memory_space<vmem>>, vector<1x32xf32>
    %c2 = arith.constant 2 : index
    %c0_2 = arith.constant 0 : index
    %2 = vector.load %arg9[%c2, %c0_2] : memref<5x32xf32, #tpu.memory_space<vmem>>, vector<1x32xf32>
    %c3 = arith.constant 3 : index
    %c0_3 = arith.constant 0 : index
    %3 = vector.load %arg9[%c3, %c0_3] : memref<5x32xf32, #tpu.memory_space<vmem>>, vector<1x32xf32>
    %c4 = arith.constant 4 : index
    %c0_4 = arith.constant 0 : index
    %4 = vector.load %arg9[%c4, %c0_4] : memref<5x32xf32, #tpu.memory_space<vmem>>, vector<1x32xf32>
    %c0_5 = arith.constant 0 : index
    %c0_6 = arith.constant 0 : index
    %5 = vector.load %arg0[%c0_5, %c0_6] : memref<12x8xbf16, #tpu.memory_space<vmem>>, vector<12x8xbf16>
    %c0_7 = arith.constant 0 : index
    %c0_8 = arith.constant 0 : index
    %6 = vector.load %arg3[%c0_7, %c0_8] : memref<8x32xbf16, #tpu.memory_space<vmem>>, vector<8x32xbf16>
    %cst = arith.constant dense<0.000000e+00> : vector<12x32xf32>
    %7 = tpu.matmul %5, %6, %cst {dimension_numbers = #tpu.dot_dimension_numbers<[1], [0], [0], [1], [0, 0, 1, 1], [], []>} : vector<12x8xbf16>, vector<8x32xbf16>, vector<12x32xf32> -> vector<12x32xf32>
    %8 = vector.broadcast %0 : vector<1x32xf32> to vector<12x32xf32>
    %9 = arith.addf %7, %8 : vector<12x32xf32>
    %cst_9 = arith.constant 0.000000e+00 : f32
    %10 = vector.broadcast %cst_9 : f32 to vector<12x32xf32>
    %11 = arith.maximumf %9, %10 : vector<12x32xf32>
    %12 = arith.truncf %11 : vector<12x32xf32> to vector<12x32xbf16>
    %13 = tpu.iota {dimensions = array<i32: 1>} : vector<2x12xi32>
    %14 = tpu.iota {dimensions = array<i32: 0>} : vector<2x12xi32>
    %c6_i32 = arith.constant 6 : i32
    %15 = vector.broadcast %c6_i32 : i32 to vector<2x12xi32>
    %16 = arith.muli %14, %15 : vector<2x12xi32>
    %17 = arith.cmpi sge, %13, %16 : vector<2x12xi32>
    %c1_i32 = arith.constant 1 : i32
    %18 = vector.broadcast %c1_i32 : i32 to vector<2x12xi32>
    %19 = arith.addi %14, %18 : vector<2x12xi32>
    %c6_i32_10 = arith.constant 6 : i32
    %20 = vector.broadcast %c6_i32_10 : i32 to vector<2x12xi32>
    %21 = arith.muli %19, %20 : vector<2x12xi32>
    %22 = arith.cmpi slt, %13, %21 : vector<2x12xi32>
    %23 = arith.andi %17, %22 : vector<2x12xi1>
    %24 = arith.extui %23 : vector<2x12xi1> to vector<2x12xi32>
    %25 = arith.sitofp %24 : vector<2x12xi32> to vector<2x12xf32>
    %cst_11 = arith.constant 1.000000e+00 : f32
    %26 = vector.broadcast %cst_11 : f32 to vector<2x12xf32>
    %27 = arith.subf %25, %26 : vector<2x12xf32>
    %cst_12 = arith.constant 1.000000e+30 : f32
    %28 = vector.broadcast %cst_12 : f32 to vector<2x12xf32>
    %29 = arith.mulf %27, %28 : vector<2x12xf32>
    %c0_13 = arith.constant 0 : index
    %c0_14 = arith.constant 0 : index
    %30 = vector.load %arg1[%c0_13, %c0_14] : memref<1x12xf32, #tpu.memory_space<vmem>>, vector<1x12xf32>
    %31 = vector.broadcast %30 : vector<1x12xf32> to vector<2x12xf32>
    %32 = arith.mulf %25, %31 : vector<2x12xf32>
    %33 = arith.truncf %32 : vector<2x12xf32> to vector<2x12xbf16>
    %cst_15 = arith.constant dense<0.000000e+00> : vector<2x32xf32>
    %34 = tpu.matmul %33, %12, %cst_15 {dimension_numbers = #tpu.dot_dimension_numbers<[1], [0], [0], [1], [0, 0, 1, 1], [], []>} : vector<2x12xbf16>, vector<12x32xbf16>, vector<2x32xf32> -> vector<2x32xf32>
    %c0_16 = arith.constant 0 : index
    %c0_17 = arith.constant 0 : index
    %35 = vector.load %arg2[%c0_16, %c0_17] : memref<2x7xbf16, #tpu.memory_space<vmem>>, vector<2x7xbf16>
    %c0_18 = arith.constant 0 : index
    %c0_19 = arith.constant 0 : index
    %36 = vector.load %arg4[%c0_18, %c0_19] : memref<7x32xbf16, #tpu.memory_space<vmem>>, vector<7x32xbf16>
    %cst_20 = arith.constant dense<0.000000e+00> : vector<2x32xf32>
    %37 = tpu.matmul %35, %36, %cst_20 {dimension_numbers = #tpu.dot_dimension_numbers<[1], [0], [0], [1], [0, 0, 1, 1], [], []>} : vector<2x7xbf16>, vector<7x32xbf16>, vector<2x32xf32> -> vector<2x32xf32>
    %38 = vector.broadcast %1 : vector<1x32xf32> to vector<2x32xf32>
    %39 = arith.addf %37, %38 : vector<2x32xf32>
    %40 = arith.truncf %34 : vector<2x32xf32> to vector<2x32xbf16>
    %c0_21 = arith.constant 0 : index
    %c0_22 = arith.constant 0 : index
    %41 = vector.load %arg5[%c0_21, %c0_22] : memref<64x32xbf16, #tpu.memory_space<vmem>>, vector<32x32xbf16>
    %cst_23 = arith.constant dense<0.000000e+00> : vector<2x32xf32>
    %42 = tpu.matmul %40, %41, %cst_23 {dimension_numbers = #tpu.dot_dimension_numbers<[1], [0], [0], [1], [0, 0, 1, 1], [], []>} : vector<2x32xbf16>, vector<32x32xbf16>, vector<2x32xf32> -> vector<2x32xf32>
    %43 = arith.truncf %39 : vector<2x32xf32> to vector<2x32xbf16>
    %c32 = arith.constant 32 : index
    %c0_24 = arith.constant 0 : index
    %44 = vector.load %arg5[%c32, %c0_24] : memref<64x32xbf16, #tpu.memory_space<vmem>>, vector<32x32xbf16>
    %cst_25 = arith.constant dense<0.000000e+00> : vector<2x32xf32>
    %45 = tpu.matmul %43, %44, %cst_25 {dimension_numbers = #tpu.dot_dimension_numbers<[1], [0], [0], [1], [0, 0, 1, 1], [], []>} : vector<2x32xbf16>, vector<32x32xbf16>, vector<2x32xf32> -> vector<2x32xf32>
    %46 = arith.addf %42, %45 : vector<2x32xf32>
    %47 = vector.broadcast %2 : vector<1x32xf32> to vector<2x32xf32>
    %48 = arith.addf %46, %47 : vector<2x32xf32>
    %c0_26 = arith.constant 0 : index
    %c0_27 = arith.constant 0 : index
    %49 = vector.load %arg6[%c0_26, %c0_27] : memref<32x64xbf16, #tpu.memory_space<vmem>>, vector<32x64xbf16>
    %cst_28 = arith.constant dense<0.000000e+00> : vector<12x64xf32>
    %50 = tpu.matmul %12, %49, %cst_28 {dimension_numbers = #tpu.dot_dimension_numbers<[1], [0], [0], [1], [0, 0, 1, 1], [], []>} : vector<12x32xbf16>, vector<32x64xbf16>, vector<12x64xf32> -> vector<12x64xf32>
    %51 = vector.extract_strided_slice %50 {offsets = [0, 0], sizes = [12, 32], strides = [1, 1]} : vector<12x64xf32> to vector<12x32xf32>
    %52 = vector.broadcast %3 : vector<1x32xf32> to vector<12x32xf32>
    %53 = arith.addf %51, %52 : vector<12x32xf32>
    %54 = vector.extract_strided_slice %50 {offsets = [0, 32], sizes = [12, 32], strides = [1, 1]} : vector<12x64xf32> to vector<12x32xf32>
    %55 = vector.broadcast %4 : vector<1x32xf32> to vector<12x32xf32>
    %56 = arith.addf %54, %55 : vector<12x32xf32>
    %57 = arith.truncf %48 : vector<2x32xf32> to vector<2x32xbf16>
    %58 = arith.truncf %53 : vector<12x32xf32> to vector<12x32xbf16>
    %cst_29 = arith.constant dense<0.000000e+00> : vector<2x12xf32>
    %59 = tpu.matmul %57, %58, %cst_29 {dimension_numbers = #tpu.dot_dimension_numbers<[1], [1], [0], [0], [0, 0, 1, 0], [], []>} : vector<2x32xbf16>, vector<12x32xbf16>, vector<2x12xf32> -> vector<2x12xf32>
    %60 = arith.addf %59, %29 : vector<2x12xf32>
    %cst_30 = arith.constant dense<0xFF800000> : vector<2xf32>
    %61 = vector.multi_reduction <maximumf>, %60, %cst_30 [1] : vector<2x12xf32> to vector<2xf32>
    %62 = vector.shape_cast %61 : vector<2xf32> to vector<2x1xf32>
    %63 = vector.broadcast %62 : vector<2x1xf32> to vector<2x12xf32>
    %64 = arith.subf %60, %63 : vector<2x12xf32>
    %65 = math.exp %64 : vector<2x12xf32>
    %cst_31 = arith.constant dense<0.000000e+00> : vector<2xf32>
    %66 = vector.multi_reduction <add>, %65, %cst_31 [1] : vector<2x12xf32> to vector<2xf32>
    %67 = vector.shape_cast %66 : vector<2xf32> to vector<2x1xf32>
    %68 = tpu.reciprocal %67 {approx = true} : vector<2x1xf32> -> vector<2x1xf32>
    %69 = vector.broadcast %68 : vector<2x1xf32> to vector<2x12xf32>
    %70 = arith.mulf %65, %69 : vector<2x12xf32>
    %71 = arith.truncf %70 : vector<2x12xf32> to vector<2x12xbf16>
    %72 = arith.truncf %56 : vector<12x32xf32> to vector<12x32xbf16>
    %cst_32 = arith.constant dense<0.000000e+00> : vector<2x32xf32>
    %73 = tpu.matmul %71, %72, %cst_32 {dimension_numbers = #tpu.dot_dimension_numbers<[1], [0], [0], [1], [0, 0, 1, 1], [], []>} : vector<2x12xbf16>, vector<12x32xbf16>, vector<2x32xf32> -> vector<2x32xf32>
    %74 = arith.truncf %73 : vector<2x32xf32> to vector<2x32xbf16>
    %c0_33 = arith.constant 0 : index
    %c0_34 = arith.constant 0 : index
    %75 = vector.load %arg7[%c0_33, %c0_34] : memref<64x16xbf16, #tpu.memory_space<vmem>>, vector<32x16xbf16>
    %cst_35 = arith.constant dense<0.000000e+00> : vector<2x16xf32>
    %76 = tpu.matmul %74, %75, %cst_35 {dimension_numbers = #tpu.dot_dimension_numbers<[1], [0], [0], [1], [0, 0, 1, 1], [], []>} : vector<2x32xbf16>, vector<32x16xbf16>, vector<2x16xf32> -> vector<2x16xf32>
    %77 = arith.truncf %39 : vector<2x32xf32> to vector<2x32xbf16>
    %c32_36 = arith.constant 32 : index
    %c0_37 = arith.constant 0 : index
    %78 = vector.load %arg7[%c32_36, %c0_37] : memref<64x16xbf16, #tpu.memory_space<vmem>>, vector<32x16xbf16>
    %cst_38 = arith.constant dense<0.000000e+00> : vector<2x16xf32>
    %79 = tpu.matmul %77, %78, %cst_38 {dimension_numbers = #tpu.dot_dimension_numbers<[1], [0], [0], [1], [0, 0, 1, 1], [], []>} : vector<2x32xbf16>, vector<32x16xbf16>, vector<2x16xf32> -> vector<2x16xf32>
    %80 = arith.addf %76, %79 : vector<2x16xf32>
    %c0_39 = arith.constant 0 : index
    %c0_40 = arith.constant 0 : index
    %81 = vector.load %arg10[%c0_39, %c0_40] : memref<1x16xf32, #tpu.memory_space<vmem>>, vector<1x16xf32>
    %82 = vector.broadcast %81 : vector<1x16xf32> to vector<2x16xf32>
    %83 = arith.addf %80, %82 : vector<2x16xf32>
    %cst_41 = arith.constant 0.000000e+00 : f32
    %84 = vector.broadcast %cst_41 : f32 to vector<2x16xf32>
    %85 = arith.maximumf %83, %84 : vector<2x16xf32>
    %86 = arith.truncf %85 : vector<2x16xf32> to vector<2x16xbf16>
    %c0_42 = arith.constant 0 : index
    %c0_43 = arith.constant 0 : index
    %87 = vector.load %arg8[%c0_42, %c0_43] : memref<16x1xbf16, #tpu.memory_space<vmem>>, vector<16x1xbf16>
    %cst_44 = arith.constant dense<0.000000e+00> : vector<2x1xf32>
    %88 = tpu.matmul %86, %87, %cst_44 {dimension_numbers = #tpu.dot_dimension_numbers<[1], [0], [0], [1], [0, 0, 1, 1], [], []>} : vector<2x16xbf16>, vector<16x1xbf16>, vector<2x1xf32> -> vector<2x1xf32>
    %c0_45 = arith.constant 0 : index
    %c0_46 = arith.constant 0 : index
    %89 = vector.load %arg11[%c0_45, %c0_46] : memref<1x1xf32, #tpu.memory_space<vmem>>, vector<1x1xf32>
    %90 = vector.broadcast %89 : vector<1x1xf32> to vector<2x1xf32>
    %91 = arith.addf %88, %90 : vector<2x1xf32>
    %c0_47 = arith.constant 0 : index
    %c0_48 = arith.constant 0 : index
    %92 = vector.load %arg12[%c0_47, %c0_48] : memref<2x1xf32, #tpu.memory_space<vmem>>, vector<2x1xf32>
    tpu.vector_store %arg12[%c0_47, %c0_48], %91 {strides = array<i32>} : memref<2x1xf32, #tpu.memory_space<vmem>>, vector<2x1xf32>,
    return
  }
}

</mosaic_0001>

<llo_original>
// kernel: tpu_custom_call.1
$region0: #{tpu_custom_call.1}
  #allocation0 [shape = 'u32[]', space=smem, size = 0x4, offset = 0x4, fixed_abs, tag = 'smem constant byte address 0x4 - core index']
  #allocation1 [shape = 'u32[72,128]{1,0:T(1,128)}', space=vmem, size = 0x9000, scoped, tag = 'internal scratch']
  #allocation2 [shape = 'f32[1,1]{1,0:T(1,128)S(1)}', space=vmem, size = 0x200, scoped, tag = 'scoped memory for tpu_custom_call.1']
  %s0 = inlined_call_operand.vmem [shape: bf16[12,8], index: 0, kind: input, shape index: {}]
  %s1 = inlined_call_operand.vmem [shape: f32[1,12], index: 1, kind: input, shape index: {}]
  %s2 = inlined_call_operand.vmem [shape: bf16[2,7], index: 2, kind: input, shape index: {}]
  %s3 = inlined_call_operand.vmem [shape: bf16[8,32], index: 3, kind: input, shape index: {}]
  %s4 = inlined_call_operand.vmem [shape: bf16[7,32], index: 4, kind: input, shape index: {}]
  %s5 = inlined_call_operand.vmem [shape: bf16[64,32], index: 5, kind: input, shape index: {}]
  %s6 = inlined_call_operand.vmem [shape: bf16[32,64], index: 6, kind: input, shape index: {}]
  %s7 = inlined_call_operand.vmem [shape: bf16[64,16], index: 7, kind: input, shape index: {}]
  %s8 = inlined_call_operand.vmem [shape: bf16[16,1], index: 8, kind: input, shape index: {}]
  %s9 = inlined_call_operand.vmem [shape: f32[5,32], index: 9, kind: input, shape index: {}]
  %s10 = inlined_call_operand.vmem [shape: f32[1,16], index: 10, kind: input, shape index: {}]
  %s11 = inlined_call_operand.<no memory space> [shape: f32[1,1], index: 11, kind: input, shape index: {}]
  %s12 = inlined_call_operand.vmem [shape: f32[2,1], index: 12, kind: output, shape index: {}]
  %s13 = sld [smem:[#allocation0]]
  $region58: #{tpu_custom_call.1} parent=0
    _
  %s15 = ssub.s32 1, %s13
  %s16 = scalar_select 0, %s15, %s13
  %v17 = vstv %s11
  %18 = vst [vmem:[#allocation2] sm:$0x1] %v17
  // Predicated region
  $region2: #{tpu_custom_call.1} parent=0 // pred_check
    _
  $region3: #{tpu_custom_call.1} parent=0 // pred_check_branch
    %20 = sbr.rel (0) target = $region5
  $region4: #{tpu_custom_call.1} parent=0 // pred_region
    _
  $region5: #{tpu_custom_call.1} parent=0 // pred_fallthru
    _
  // Predicated region
  $region6: #{tpu_custom_call.1} parent=0 // pred_check
    _
  $region7: #{tpu_custom_call.1} parent=0 // pred_check_branch
    %22 = sbr.rel (0) target = $region9
  $region8: #{tpu_custom_call.1} parent=0 // pred_region
    _
  $region9: #{tpu_custom_call.1} parent=0 // pred_fallthru
    _
  // Predicated region
  $region10: #{tpu_custom_call.1} parent=0 // pred_check
    _
  $region11: #{tpu_custom_call.1} parent=0 // pred_check_branch
    %24 = sbr.rel (0) target = $region13
  $region12: #{tpu_custom_call.1} parent=0 // pred_region
    _
  $region13: #{tpu_custom_call.1} parent=0 // pred_fallthru
    _
  // Predicated region
  $region14: #{tpu_custom_call.1} parent=0 // pred_check
    _
  $region15: #{tpu_custom_call.1} parent=0 // pred_check_branch
    %26 = sbr.rel (0) target = $region17
  $region16: #{tpu_custom_call.1} parent=0 // pred_region
    _
  $region17: #{tpu_custom_call.1} parent=0 // pred_fallthru
    _
  // Predicated region
  $region18: #{tpu_custom_call.1} parent=0 // pred_check
    _
  $region19: #{tpu_custom_call.1} parent=0 // pred_check_branch
    %28 = sbr.rel (0) target = $region21
  $region20: #{tpu_custom_call.1} parent=0 // pred_region
    _
  $region21: #{tpu_custom_call.1} parent=0 // pred_fallthru
    _
  // Predicated region
  $region22: #{tpu_custom_call.1} parent=0 // pred_check
    _
  $region23: #{tpu_custom_call.1} parent=0 // pred_check_branch
    %30 = sbr.rel (0) target = $region25
  $region24: #{tpu_custom_call.1} parent=0 // pred_region
    _
  $region25: #{tpu_custom_call.1} parent=0 // pred_fallthru
    _
  // Predicated region
  $region26: #{tpu_custom_call.1} parent=0 // pred_check
    _
  $region27: #{tpu_custom_call.1} parent=0 // pred_check_branch
    %32 = sbr.rel (0) target = $region29
  $region28: #{tpu_custom_call.1} parent=0 // pred_region
    _
  $region29: #{tpu_custom_call.1} parent=0 // pred_fallthru
    _
  // Predicated region
  $region30: #{tpu_custom_call.1} parent=0 // pred_check
    _
  $region31: #{tpu_custom_call.1} parent=0 // pred_check_branch
    %34 = sbr.rel (0) target = $region33
  $region32: #{tpu_custom_call.1} parent=0 // pred_region
    _
  $region33: #{tpu_custom_call.1} parent=0 // pred_fallthru
    _
  // Predicated region
  $region34: #{tpu_custom_call.1} parent=0 // pred_check
    _
  $region35: #{tpu_custom_call.1} parent=0 // pred_check_branch
    %36 = sbr.rel (0) target = $region37
  $region36: #{tpu_custom_call.1} parent=0 // pred_region
    _
  $region37: #{tpu_custom_call.1} parent=0 // pred_fallthru
    _
  // Predicated region
  $region38: #{tpu_custom_call.1} parent=0 // pred_check
    _
  $region39: #{tpu_custom_call.1} parent=0 // pred_check_branch
    %38 = sbr.rel (0) target = $region41
  $region40: #{tpu_custom_call.1} parent=0 // pred_region
    _
  $region41: #{tpu_custom_call.1} parent=0 // pred_fallthru
    _
  // Predicated region
  $region42: #{tpu_custom_call.1} parent=0 // pred_check
    _
  $region43: #{tpu_custom_call.1} parent=0 // pred_check_branch
    %40 = sbr.rel (0) target = $region45
  $region44: #{tpu_custom_call.1} parent=0 // pred_region
    _
  $region45: #{tpu_custom_call.1} parent=0 // pred_fallthru
    _
  // Predicated region
  $region46: #{tpu_custom_call.1} parent=0 // pred_check
    _
  $region47: #{tpu_custom_call.1} parent=0 // pred_check_branch
    %42 = sbr.rel (0) target = $region49
  $region48: #{tpu_custom_call.1} parent=0 // pred_region
    _
  $region49: #{tpu_custom_call.1} parent=0 // pred_fallthru
    _
  %v44 = vld [vmem:[%s9] sm:$0x1]
  %v45 = vld [vmem:[%s9 + $0x1] sm:$0x1]
  %v46 = vld [vmem:[%s9 + $0x2] sm:$0x1]
  %v47 = vld [vmem:[%s9 + $0x3] sm:$0x1]
  %v48 = vld [vmem:[%s9 + $0x4] sm:$0x1]
  %v49 = vld [vmem:[%s0] sm:$0xf]
  %v50 = vld [vmem:[%s0 + $0x4] sm:$0x3]
  %v51 = vld [vmem:[%s3] sm:$0xf]
  %v52 = vperm.slane %v44, 0
  %v55 = vunpack.c.l.b16 %v49
  %v56 = vunpack.c.l.b16 %v50
  %v57 = vpack.c.b16 %v56, %v55
  %vm58 = vcmask 64512
  %v60 = vsel %vm58, %v57, 0
  %vm62 = vcmask 1043456
  %v64 = vsel %vm62, %v51, 0
  %66 = vmatpush.bf16.msra.mxu0 0
  %67 = vmatpush.bf16.msra.mxu0 0
  %68 = vmatpush.bf16.msra.mxu0 0
  %69 = vmatpush.bf16.msra.mxu0 0
  %70 = vmatpush.bf16.msra.mxu0 0
  %71 = vmatpush.bf16.msra.mxu0 0
  %72 = vmatpush.bf16.msra.mxu0 0
  %73 = vmatpush.bf16.msra.mxu0 %v64
  %74 = vmatmul.bf16.gmra.mxu0 %v60
  %v75 = vpop.f32.mrf.mxu0
  %v76 = vadd.f32 %v52, %v75
  %v77 = vpop.f32.mrf.mxu0
  %v78 = vadd.f32 %v52, %v77
  %79 = vdwg.mxu0
  %v80 = vmax.f32 %v76, 0.0
  %v81 = vmax.f32 %v78, 0.0
  %v82 = vpack.c.bf16 %v81, %v80
  %v83 = vlaneseq
  %v84 = vand.u32 %v83, 127
  %v85 = vlaneseq
  %v86 = vshrl.u32 %v85, 7
  %v87 = vmul.u32 %v86, 6
  %vm88 = vcmp.ge.s32.totalorder %v84, %v87
  %v89 = vadd.s32 %v86, 1
  %v90 = vmul.u32 %v89, 6
  %vm91 = vcmp.lt.s32.totalorder %v84, %v90
  %vm92 = vmand %vm88, %vm91
  %v93 = vsel %vm92, 1, 0
  %v94 = vcvt.s32.f32 %v93
  %v95 = vsub.f32 %v94, 1.0
  %v96 = vmul.f32 %v95, 1e+30
  %v97 = vld [vmem:[%s1] sm:$0x1]
  %v99 = vperm.slane %v97, 0
  %v101 = vmul.f32 %v94, %v99
  %v102 = vpack.c.bf16 %v101, %v101
  %vm103 = vcmask 97280
  %v105 = vsel %vm103, %v102, 0
  %vm107 = vcmask 1045504
  %v109 = vsel %vm107, %v82, 0
  %111 = vmatpush.bf16.msra.mxu0 0
  %112 = vmatpush.bf16.msra.mxu0 0
  %113 = vmatpush.bf16.msra.mxu0 0
  %114 = vmatpush.bf16.msra.mxu0 0
  %115 = vmatpush.bf16.msra.mxu0 0
  %116 = vmatpush.bf16.msra.mxu0 0
  %117 = vmatpush.bf16.msra.mxu0 0
  %118 = vmatpush.bf16.msra.mxu0 %v109
  %119 = vmatmul.bf16.gmra.mxu0 %v105
  %v120 = vpop.f32.mrf.mxu0
  %v121 = vadd.f32 0.0, %v120
  %v122 = vpop.f32.mrf.mxu0
  %123 = vdwg.mxu0
  %v124 = vld [vmem:[%s2] sm:$0x1]
  %v125 = vld [vmem:[%s4] sm:$0xf]
  %v126 = vperm.slane %v45, 0
  %vm127 = vcmask 56320
  %v129 = vsel %vm127, %v124, 0
  %vm131 = vcmask 1042432
  %v132 = vsel %vm131, 4294967295, 65535
  %v133 = vsel %vm62, %v132, 0
  %v135 = vand.u32 %v125, %v133
  %137 = vmatpush.bf16.msra.mxu0 0
  %138 = vmatpush.bf16.msra.mxu0 0
  %139 = vmatpush.bf16.msra.mxu0 0
  %140 = vmatpush.bf16.msra.mxu0 0
  %141 = vmatpush.bf16.msra.mxu0 0
  %142 = vmatpush.bf16.msra.mxu0 0
  %143 = vmatpush.bf16.msra.mxu0 0
  %144 = vmatpush.bf16.msra.mxu0 %v135
  %145 = vmatmul.bf16.gmra.mxu0 %v129
  %v146 = vpop.f32.mrf.mxu0
  %v147 = vadd.f32 %v126, %v146
  %v148 = vpop.f32.mrf.mxu0
  %149 = vdwg.mxu0
  %v150 = vpack.c.bf16 %v121, %v121
  %v151 = vld [vmem:[%s5] sm:$0xf]
  %v152 = vld [vmem:[%s5 + $0x4] sm:$0xf]
  %v153 = vld [vmem:[%s5 + $0x8] sm:$0xf]
  %v154 = vld [vmem:[%s5 + $0xc] sm:$0xf]
  %v155 = vpack.c.bf16 %v147, %v147
  %v156 = vld [vmem:[%s5 + $0x10] sm:$0xf]
  %v157 = vld [vmem:[%s5 + $0x14] sm:$0xf]
  %v158 = vld [vmem:[%s5 + $0x18] sm:$0xf]
  %v159 = vld [vmem:[%s5 + $0x1c] sm:$0xf]
  %v164 = vunpack.c.l.b16 %v156
  %v165 = vunpack.c.l.b16 %v157
  %v166 = vunpack.c.l.b16 %v158
  %v167 = vunpack.c.l.b16 %v159
  %v168 = vpack.c.b16 %v165, %v164
  %v169 = vpack.c.b16 %v167, %v166
  %vm172 = vcmask 261120
  %v174 = vsel %vm172, %v155, 0
  %176 = vmatpush.bf16.msra.mxu0 0
  %177 = vmatpush.bf16.msra.mxu0 0
  %178 = vmatpush.bf16.msra.mxu0 0
  %179 = vmatpush.bf16.msra.mxu0 0
  %180 = vmatpush.bf16.msra.mxu0 0
  %181 = vmatpush.bf16.msra.mxu0 0
  %182 = vmatpush.bf16.msra.mxu0 %v169
  %183 = vmatpush.bf16.msra.mxu0 %v168
  %184 = vmatmul.bf16.gmra.mxu0 %v174
  %v185 = vpop.f32.mrf.mxu0
  %v186 = vadd.f32 0.0, %v185
  %v187 = vpop.f32.mrf.mxu0
  %188 = vdwg.mxu0
  %v193 = vunpack.c.l.b16 %v151
  %v194 = vunpack.c.l.b16 %v152
  %v195 = vunpack.c.l.b16 %v153
  %v196 = vunpack.c.l.b16 %v154
  %v197 = vpack.c.b16 %v194, %v193
  %v198 = vpack.c.b16 %v196, %v195
  %v202 = vsel %vm172, %v150, 0
  %204 = vmatpush.bf16.msra.mxu0 0
  %205 = vmatpush.bf16.msra.mxu0 0
  %206 = vmatpush.bf16.msra.mxu0 0
  %207 = vmatpush.bf16.msra.mxu0 0
  %208 = vmatpush.bf16.msra.mxu0 0
  %209 = vmatpush.bf16.msra.mxu0 0
  %210 = vmatpush.bf16.msra.mxu0 %v198
  %211 = vmatpush.bf16.msra.mxu0 %v197
  %212 = vmatmul.bf16.gmra.mxu0 %v202
  %v213 = vpop.f32.mrf.mxu0
  %v214 = vadd.f32 %v186, %v213
  %v215 = vpop.f32.mrf.mxu0
  %216 = vdwg.mxu0
  %v217 = vperm.slane %v46, 0
  %v218 = vadd.f32 %v214, %v217
  %v219 = vld [vmem:[%s6] sm:$0xf]
  %v220 = vld [vmem:[%s6 + $0x4] sm:$0xf]
  %v221 = vld [vmem:[%s6 + $0x8] sm:$0xf]
  %v222 = vld [vmem:[%s6 + $0xc] sm:$0xf]
  %v227 = vunpack.c.l.b16 %v219
  %v228 = vunpack.c.l.b16 %v220
  %v229 = vunpack.c.l.b16 %v221
  %v230 = vunpack.c.l.b16 %v222
  %v231 = vpack.c.b16 %v228, %v227
  %v232 = vpack.c.b16 %v230, %v229
  %v235 = vsel %vm172, %v82, 0
  %237 = vmatpush.bf16.msra.mxu0 0
  %238 = vmatpush.bf16.msra.mxu0 0
  %239 = vmatpush.bf16.msra.mxu0 0
  %240 = vmatpush.bf16.msra.mxu0 0
  %241 = vmatpush.bf16.msra.mxu0 0
  %242 = vmatpush.bf16.msra.mxu0 0
  %243 = vmatpush.bf16.msra.mxu0 %v232
  %244 = vmatpush.bf16.msra.mxu0 %v231
  %245 = vmatmul.bf16.gmra.mxu0 %v235
  %v246 = vpop.f32.mrf.mxu0
  %v247 = vadd.f32 0.0, %v246
  %v248 = vpop.f32.mrf.mxu0
  %v249 = vadd.f32 0.0, %v248
  %250 = vdwg.mxu0
  %v251 = vperm.slane %v47, 0
  %v252 = vadd.f32 %v247, %v251
  %v253 = vadd.f32 %v249, %v251
  %v254 = vperm.slane %v48, 0
  %256 = vrot.lane.b32.xlu0 %v254, 32
  %v257 = vpop.permute.xlu0 %256
  %v259 = vadd.f32 %v247, %v257
  %v260 = vadd.f32 %v249, %v257
  %v261 = vpack.c.bf16 %v218, %v218
  %v262 = vpack.c.bf16 %v253, %v252
  %v264 = vsel %vm172, %v261, 0
  %v267 = vsel %vm172, %v262, 0
  %269 = vmatpush.bf16.xpose.msra.mxu0 0
  %270 = vmatpush.bf16.xpose.msra.mxu0 0
  %271 = vmatpush.bf16.xpose.msra.mxu0 0
  %272 = vmatpush.bf16.xpose.msra.mxu0 0
  %273 = vmatpush.bf16.xpose.msra.mxu0 0
  %274 = vmatpush.bf16.xpose.msra.mxu0 0
  %275 = vmatpush.bf16.xpose.msra.mxu0 0
  %276 = vmatpush.bf16.xpose.msra.mxu0 %v267
  %277 = vmatmul.bf16.gmra.mxu0 %v264
  %v278 = vpop.f32.mrf.mxu0
  %v279 = vadd.f32 %v96, %v278
  %v280 = vpop.f32.mrf.mxu0
  %281 = vdwg.mxu0
  %vm282 = vcmask 91136
  %v283 = vsel %vm282, %v279, -inf
  %284 = vmax.xlane.f32.xlu0 %v283
  %v285 = vpop.xlane.xlu0 %284
  %v286 = vsub.f32 %v279, %v285
  %v287 = vmul.f32 %v286, 1.442695
  %v288 = vpow.pop %v287
  %v289 = vsel %vm282, %v288, 0.0
  %290 = vadd.xlane.f32.xlu0 %v289
  %v291 = vpop.xlane.xlu0 %290
  %v292 = vrcp.pop %v291
  %v293 = vmul.f32 %v288, %v292
  %v294 = vpack.c.bf16 %v293, %v293
  %v295 = vpack.c.bf16 %v260, %v259
  %297 = vrot.lane.b32.xlu0 %v295, 96
  %v298 = vpop.permute.xlu0 %297
  %v300 = vsel %vm103, %v294, 0
  %v303 = vsel %vm107, %v298, 0
  %305 = vmatpush.bf16.msra.mxu0 0
  %306 = vmatpush.bf16.msra.mxu0 0
  %307 = vmatpush.bf16.msra.mxu0 0
  %308 = vmatpush.bf16.msra.mxu0 0
  %309 = vmatpush.bf16.msra.mxu0 0
  %310 = vmatpush.bf16.msra.mxu0 0
  %311 = vmatpush.bf16.msra.mxu0 0
  %312 = vmatpush.bf16.msra.mxu0 %v303
  %313 = vmatmul.bf16.gmra.mxu0 %v300
  %v314 = vpop.f32.mrf.mxu0
  %v315 = vadd.f32 0.0, %v314
  %v316 = vpop.f32.mrf.mxu0
  %317 = vdwg.mxu0
  %v318 = vpack.c.bf16 %v315, %v315
  %v319 = vld [vmem:[%s7] sm:$0xf]
  %v320 = vld [vmem:[%s7 + $0x4] sm:$0xf]
  %v321 = vld [vmem:[%s7 + $0x8] sm:$0xf]
  %v322 = vld [vmem:[%s7 + $0xc] sm:$0xf]
  %v323 = vld [vmem:[%s7 + $0x10] sm:$0xf]
  %v324 = vld [vmem:[%s7 + $0x14] sm:$0xf]
  %v325 = vld [vmem:[%s7 + $0x18] sm:$0xf]
  %v326 = vld [vmem:[%s7 + $0x1c] sm:$0xf]
  %v331 = vunpack.c.l.b16 %v323
  %v332 = vunpack.c.l.b16 %v324
  %v333 = vunpack.c.l.b16 %v325
  %v334 = vunpack.c.l.b16 %v326
  %v335 = vpack.c.b16 %v332, %v331
  %v336 = vpack.c.b16 %v334, %v333
  %339 = vmatpush.bf16.msra.mxu0 0
  %340 = vmatpush.bf16.msra.mxu0 0
  %341 = vmatpush.bf16.msra.mxu0 0
  %342 = vmatpush.bf16.msra.mxu0 0
  %343 = vmatpush.bf16.msra.mxu0 0
  %344 = vmatpush.bf16.msra.mxu0 0
  %345 = vmatpush.bf16.msra.mxu0 %v336
  %346 = vmatpush.bf16.msra.mxu0 %v335
  %347 = vmatmul.bf16.gmra.mxu0 %v174
  %v348 = vpop.f32.mrf.mxu0
  %v349 = vadd.f32 0.0, %v348
  %v350 = vpop.f32.mrf.mxu0
  %351 = vdwg.mxu0
  %v356 = vunpack.c.l.b16 %v319
  %v357 = vunpack.c.l.b16 %v320
  %v358 = vunpack.c.l.b16 %v321
  %v359 = vunpack.c.l.b16 %v322
  %v360 = vpack.c.b16 %v357, %v356
  %v361 = vpack.c.b16 %v359, %v358
  %v365 = vsel %vm172, %v318, 0
  %367 = vmatpush.bf16.msra.mxu0 0
  %368 = vmatpush.bf16.msra.mxu0 0
  %369 = vmatpush.bf16.msra.mxu0 0
  %370 = vmatpush.bf16.msra.mxu0 0
  %371 = vmatpush.bf16.msra.mxu0 0
  %372 = vmatpush.bf16.msra.mxu0 0
  %373 = vmatpush.bf16.msra.mxu0 %v361
  %374 = vmatpush.bf16.msra.mxu0 %v360
  %375 = vmatmul.bf16.gmra.mxu0 %v365
  %v376 = vpop.f32.mrf.mxu0
  %v377 = vadd.f32 %v349, %v376
  %v378 = vpop.f32.mrf.mxu0
  %379 = vdwg.mxu0
  %v380 = vld [vmem:[%s10] sm:$0x1]
  %v382 = vperm.slane %v380, 0
  %v384 = vadd.f32 %v377, %v382
  %v385 = vmax.f32 %v384, 0.0
  %v386 = vpack.c.bf16 %v385, %v385
  %v387 = vld [vmem:[%s8] sm:$0xf]
  %v388 = vld [vmem:[%s8 + $0x4] sm:$0xf]
  %v389 = vld [vmem:[#allocation2] sm:$0x1]
  %v391 = vperm.slane %v389, 0
  %v395 = vunpack.c.l.b16 %v387
  %v396 = vunpack.c.l.b16 %v388
  %v397 = vpack.c.b16 %v396, %v395
  %vm399 = vcmask 130048
  %v401 = vsel %vm399, %v386, 0
  %403 = vmatpush.bf16.msra.mxu0 0
  %404 = vmatpush.bf16.msra.mxu0 0
  %405 = vmatpush.bf16.msra.mxu0 0
  %406 = vmatpush.bf16.msra.mxu0 0
  %407 = vmatpush.bf16.msra.mxu0 0
  %408 = vmatpush.bf16.msra.mxu0 0
  %409 = vmatpush.bf16.msra.mxu0 0
  %410 = vmatpush.bf16.msra.mxu0 %v397
  %411 = vmatmul.bf16.gmra.mxu0 %v401
  %v412 = vpop.f32.mrf.mxu0
  %v413 = vadd.f32 %v391, %v412
  %v414 = vpop.f32.mrf.mxu0
  %415 = vdwg.mxu0
  %vm416 = vcmask 1024
  %417 = vst.msk [vmem:[%s12] sm:$0x3] %vm416, %v413
  // Predicated region
  $region50: #{tpu_custom_call.1} parent=0 // pred_check
    _
  $region51: #{tpu_custom_call.1} parent=0 // pred_check_branch
    %419 = sbr.rel (0) target = $region53
  $region52: #{tpu_custom_call.1} parent=0 // pred_region
    _
  $region53: #{tpu_custom_call.1} parent=0 // pred_fallthru
    _
  // Predicated region
  $region54: #{tpu_custom_call.1} parent=0 // pred_check
    _
  $region55: #{tpu_custom_call.1} parent=0 // pred_check_branch
    %421 = sbr.rel (0) target = $region57
  $region56: #{tpu_custom_call.1} parent=0 // pred_region
    _
  $region57: #{tpu_custom_call.1} parent=0 // pred_fallthru
    _

</llo_original>
